<compile_context>
chip_gen: v6e
topology: v6e:2x2x1
jax: 0.10.0
libtpu: 0.0.40
codegen_flags: <defaults>
</compile_context>

<pallas_src>
import jax
import jax.numpy as jnp
from jax.experimental import pallas as pl
from jax.experimental.pallas import tpu as pltpu


def _round_up(n, m):
    return ((n + m - 1) // m) * m


def _dnf_kernel(x_ref, cw_ref, cb_ref, dw_ref, db_ref, o_ref):
    # x_ref : [TILE_B, P]     input tile in its native dtype (cast in VMEM for the MXU)
    # cw_ref: [P, C_pad]      pre-transposed conjunction weights (matmul dtype)
    # cb_ref: [1, C_pad]      delta-scaled conjunction bias (f32, zero in padded cols)
    # dw_ref: [C_pad, N_pad]  pre-transposed disjunction weights (zero padded rows/cols)
    # db_ref: [1, N_pad]      delta-scaled disjunction bias (f32)
    # o_ref : [TILE_B, N_pad] output tile (bf16 or f32)

    # --- conjunction (AND) layer: matmul + bias + tanh (f32 accumulation) ---
    x = x_ref[...].astype(cw_ref.dtype)                 # in-VMEM cast (VPU, cheap)
    conj = jnp.dot(x, cw_ref[...], preferred_element_type=jnp.float32)
    h = jnp.tanh(conj + cb_ref[...])                    # [TILE_B, C_pad] f32

    # --- disjunction (OR) layer: matmul + bias ---
    disj = jnp.dot(h.astype(dw_ref.dtype), dw_ref[...],
                   preferred_element_type=jnp.float32)
    disj = disj + db_ref[...]

    # --- classifier head: sigmoid ---
    o_ref[...] = jax.nn.sigmoid(disj).astype(o_ref.dtype)


def dnf_classifier_forward(x, conj_w, disj_w, *, delta=0.01, tile_b=None,
                           matmul_dtype=jnp.bfloat16):
    """DNFClassifier forward.

    x:      [B, num_preds]
    conj_w: [num_conjuncts, num_preds]   (PyTorch [out, in] layout)
    disj_w: [n_out, num_conjuncts]       (PyTorch [out, in] layout)
    """
    x = jnp.asarray(x)
    conj_w = jnp.asarray(conj_w, jnp.float32)
    disj_w = jnp.asarray(disj_w, jnp.float32)

    B, P = x.shape
    C = conj_w.shape[0]
    N = disj_w.shape[0]

    is_bf16 = jnp.dtype(matmul_dtype) == jnp.dtype(jnp.bfloat16)
    out_dtype = jnp.bfloat16 if is_bf16 else jnp.float32

    # ---- bias terms from the UNPADDED weights, pre-scaled by delta (hoisted) ----
    abs_cw = jnp.abs(conj_w)
    conj_bias = delta * (jnp.max(abs_cw, axis=1) - jnp.sum(abs_cw, axis=1))   # [C]
    abs_dw = jnp.abs(disj_w)
    disj_bias = delta * (jnp.sum(abs_dw, axis=1) - jnp.max(abs_dw, axis=1))   # [N]

    # ---- pad only the (small, resident) weights/biases to lane-dense 128-multiples ----
    C_pad = _round_up(C, 128)
    N_pad = _round_up(N, 128)

    cw_t = jnp.zeros((P, C_pad), matmul_dtype).at[:, :C].set(
        conj_w.T.astype(matmul_dtype))
    dw_t = jnp.zeros((C_pad, N_pad), matmul_dtype).at[:C, :N].set(
        disj_w.T.astype(matmul_dtype))
    cb = jnp.zeros((1, C_pad), jnp.float32).at[0, :C].set(conj_bias)
    db = jnp.zeros((1, N_pad), jnp.float32).at[0, :N].set(disj_bias)
    # Invariant (correctness of the padded conjuncts): cw_t[:, C:] == 0 and
    # cb[0, C:] == 0  =>  tanh(0) == 0, which meets dw_t[C:, :] == 0.

    x_bytes = jnp.dtype(x.dtype).itemsize
    w_bytes = jnp.dtype(matmul_dtype).itemsize
    o_bytes = jnp.dtype(out_dtype).itemsize

    # ---- derive batch tile from a conservative VMEM budget (safe on v5e/v6e/v7x) ----
    resident = 2 * (P * C_pad + C_pad * N_pad) * w_bytes + 2 * (C_pad + N_pad) * 4
    per_row = (2 * P * x_bytes              # double-buffered x tile
               + 2 * N_pad * o_bytes        # double-buffered out tile
               + (2 * C_pad + N_pad) * 4)   # f32 conj / h / disj intermediates
    if tile_b is None:
        budget = 24 << 20                   # stays well under v7x's 64 MiB physical VMEM
        tile_b = (budget - resident) // per_row if budget > resident else 256
        tile_b = min(int(tile_b), 2048)
    tile_b = max(8, min(int(tile_b), _round_up(B, 8)))
    if B > 16:
        # Guarantee >= 2 grid steps so v7x's two TensorCores both get work.
        tile_b = min(tile_b, _round_up(pl.cdiv(B, 2), 8))
    # 256-aligned tiles keep the 2x256x256 MXU fully fed on v6e/v7x; 8-aligned otherwise.
    tile_b = (tile_b // 256) * 256 if tile_b >= 256 else _round_up(tile_b, 8)

    grid_b = pl.cdiv(B, tile_b)

    vmem_est = resident + tile_b * per_row
    vmem_limit = int(min(max(vmem_est * 3 // 2, 32 << 20), 64 << 20))

    out_padded = pl.pallas_call(
        _dnf_kernel,
        out_shape=jax.ShapeDtypeStruct((B, N_pad), out_dtype),
        grid=(grid_b,),
        in_specs=[
            # x streams over the batch; full-extent last dim (no padded copy of x).
            pl.BlockSpec((tile_b, P), lambda i: (i, 0)),
            pl.BlockSpec((P, C_pad), lambda i: (0, 0)),      # conj weights: resident
            pl.BlockSpec((1, C_pad), lambda i: (0, 0)),      # conj bias:    resident
            pl.BlockSpec((C_pad, N_pad), lambda i: (0, 0)),  # disj weights: resident
            pl.BlockSpec((1, N_pad), lambda i: (0, 0)),      # disj bias:    resident
        ],
        out_specs=pl.BlockSpec((tile_b, N_pad), lambda i: (i, 0)),
        compiler_params=pltpu.CompilerParams(
            dimension_semantics=("parallel",),
            vmem_limit_bytes=vmem_limit,
        ),
    )(x, cw_t, cb, dw_t, db)

    return out_padded[:, :N].astype(jnp.float32)


def _reference_forward(x, conj_w, disj_w, delta=0.01):
    abs_cw = jnp.abs(conj_w)
    conj_bias = jnp.max(abs_cw, axis=1) - jnp.sum(abs_cw, axis=1)
    h = jnp.tanh(x @ conj_w.T + delta * conj_bias[None, :])
    abs_dw = jnp.abs(disj_w)
    disj_bias = jnp.sum(abs_dw, axis=1) - jnp.max(abs_dw, axis=1)
    return jax.nn.sigmoid(h @ disj_w.T + delta * disj_bias[None, :])


if __name__ == "__main__":
    # Small, module-consistent shapes.
    batch = 8
    num_preds = 32
    num_conjuncts = 16
    n_out = 4
    delta = 0.01

    key = jax.random.PRNGKey(0)
    kx, kc, kd, kx2 = jax.random.split(key, 4)

    x = jax.random.normal(kx, (batch, num_preds), dtype=jnp.float32)
    # weight_init_type='normal': N(0, 0.1) deterministic init (synthetic, no checkpoint).
    conj_w = 0.1 * jax.random.normal(kc, (num_conjuncts, num_preds), dtype=jnp.float32)
    disj_w = 0.1 * jax.random.normal(kd, (n_out, num_conjuncts), dtype=jnp.float32)

    ref = _reference_forward(x, conj_w, disj_w, delta=delta)

    # Default bf16-operand path (f32 accumulation, bf16 writeback): relaxed tolerance.
    out_bf16 = dnf_classifier_forward(x, conj_w, disj_w, delta=delta)
    out_bf16 = jax.block_until_ready(out_bf16)
    assert out_bf16.shape == (batch, n_out)
    assert jnp.allclose(out_bf16, ref, atol=2e-2, rtol=2e-2)

    # f32 matmul path: strict check against the reference.
    out_f32 = dnf_classifier_forward(x, conj_w, disj_w, delta=delta,
                                     matmul_dtype=jnp.float32)
    out_f32 = jax.block_until_ready(out_f32)
    assert out_f32.shape == (batch, n_out)
    assert jnp.allclose(out_f32, ref, atol=1e-5, rtol=1e-5)

    # Multi-step grid + ragged batch tail (exercises the dropped out-of-bounds rows).
    batch2 = 40
    x2 = jax.random.normal(kx2, (batch2, num_preds), dtype=jnp.float32)
    ref2 = _reference_forward(x2, conj_w, disj_w, delta=delta)
    out2 = jax.block_until_ready(
        dnf_classifier_forward(x2, conj_w, disj_w, delta=delta))
    assert out2.shape == (batch2, n_out)
    assert jnp.allclose(out2, ref2, atol=2e-2, rtol=2e-2)

    print("KERNEL_OK")
</pallas_src>

<mosaic_0001>
module attributes {stable_mosaic.version = 11 : i64} {
  func.func @_dnf_kernel(%arg0: i32, %arg1: memref<8x32xf32, #tpu.memory_space<vmem>>, %arg2: memref<32x128xbf16, #tpu.memory_space<vmem>>, %arg3: memref<1x128xf32, #tpu.memory_space<vmem>>, %arg4: memref<128x128xbf16, #tpu.memory_space<vmem>>, %arg5: memref<1x128xf32, #tpu.memory_space<vmem>>, %arg6: memref<8x128xbf16, #tpu.memory_space<vmem>>) attributes {dimension_semantics = [#tpu.dimension_semantics<parallel>], iteration_bounds = array<i64: 1>, scalar_prefetch = 0 : i64, scratch_operands = 0 : i64, tpu.core_type = #tpu.core_type<tc>, window_params = [{transform_indices = @transform_0, window_bounds = array<i64: 8, 32>}, {pipeline_mode = #tpu.pipeline_mode<synchronous>, transform_indices = @transform_1, window_bounds = array<i64: 32, 128>}, {pipeline_mode = #tpu.pipeline_mode<synchronous>, transform_indices = @transform_2, window_bounds = array<i64: 1, 128>}, {pipeline_mode = #tpu.pipeline_mode<synchronous>, transform_indices = @transform_3, window_bounds = array<i64: 128, 128>}, {pipeline_mode = #tpu.pipeline_mode<synchronous>, transform_indices = @transform_4, window_bounds = array<i64: 1, 128>}, {transform_indices = @transform_5, window_bounds = array<i64: 8, 128>}]} {
    %c0 = arith.constant 0 : index
    %c0_0 = arith.constant 0 : index
    %0 = vector.load %arg1[%c0, %c0_0] : memref<8x32xf32, #tpu.memory_space<vmem>>, vector<8x32xf32>
    %1 = arith.truncf %0 : vector<8x32xf32> to vector<8x32xbf16>
    %c0_1 = arith.constant 0 : index
    %c0_2 = arith.constant 0 : index
    %2 = vector.load %arg2[%c0_1, %c0_2] : memref<32x128xbf16, #tpu.memory_space<vmem>>, vector<32x128xbf16>
    %cst = arith.constant dense<0.000000e+00> : vector<8x128xf32>
    %3 = tpu.matmul %1, %2, %cst {dimension_numbers = #tpu.dot_dimension_numbers<[1], [0], [0], [1], [0, 0, 1, 1], [], []>} : vector<8x32xbf16>, vector<32x128xbf16>, vector<8x128xf32> -> vector<8x128xf32>
    %c0_3 = arith.constant 0 : index
    %c0_4 = arith.constant 0 : index
    %4 = vector.load %arg3[%c0_3, %c0_4] : memref<1x128xf32, #tpu.memory_space<vmem>>, vector<1x128xf32>
    %5 = vector.broadcast %4 : vector<1x128xf32> to vector<8x128xf32>
    %6 = arith.addf %3, %5 : vector<8x128xf32>
    %7 = math.tanh %6 : vector<8x128xf32>
    %8 = arith.truncf %7 : vector<8x128xf32> to vector<8x128xbf16>
    %c0_5 = arith.constant 0 : index
    %c0_6 = arith.constant 0 : index
    %9 = vector.load %arg4[%c0_5, %c0_6] : memref<128x128xbf16, #tpu.memory_space<vmem>>, vector<128x128xbf16>
    %cst_7 = arith.constant dense<0.000000e+00> : vector<8x128xf32>
    %10 = tpu.matmul %8, %9, %cst_7 {dimension_numbers = #tpu.dot_dimension_numbers<[1], [0], [0], [1], [0, 0, 1, 1], [], []>} : vector<8x128xbf16>, vector<128x128xbf16>, vector<8x128xf32> -> vector<8x128xf32>
    %c0_8 = arith.constant 0 : index
    %c0_9 = arith.constant 0 : index
    %11 = vector.load %arg5[%c0_8, %c0_9] : memref<1x128xf32, #tpu.memory_space<vmem>>, vector<1x128xf32>
    %12 = vector.broadcast %11 : vector<1x128xf32> to vector<8x128xf32>
    %13 = arith.addf %10, %12 : vector<8x128xf32>
    %14 = arith.negf %13 : vector<8x128xf32>
    %15 = math.exp %14 : vector<8x128xf32>
    %cst_10 = arith.constant 1.000000e+00 : f32
    %16 = vector.broadcast %cst_10 : f32 to vector<8x128xf32>
    %17 = arith.addf %16, %15 : vector<8x128xf32>
    %18 = arith.divf %16, %17 : vector<8x128xf32>
    %19 = arith.truncf %18 : vector<8x128xf32> to vector<8x128xbf16>
    %c0_11 = arith.constant 0 : index
    %c0_12 = arith.constant 0 : index
    %20 = vector.load %arg6[%c0_11, %c0_12] : memref<8x128xbf16, #tpu.memory_space<vmem>>, vector<8x128xbf16>
    tpu.vector_store %arg6[%c0_11, %c0_12], %19 {strides = array<i32>} : memref<8x128xbf16, #tpu.memory_space<vmem>>, vector<8x128xbf16>,
    return
  }
  func.func @transform_0(%arg0: i32) -> (i32, i32) {
    %c0_i32 = arith.constant 0 : i32
    %c0_i32_0 = arith.constant 0 : i32
    return %arg0, %c0_i32 : i32, i32
  }
  func.func @transform_1(%arg0: i32) -> (i32, i32) {
    %c0_i32 = arith.constant 0 : i32
    %c0_i32_0 = arith.constant 0 : i32
    %c0_i32_1 = arith.constant 0 : i32
    return %c0_i32, %c0_i32_0 : i32, i32
  }
  func.func @transform_2(%arg0: i32) -> (i32, i32) {
    %c0_i32 = arith.constant 0 : i32
    %c0_i32_0 = arith.constant 0 : i32
    %c0_i32_1 = arith.constant 0 : i32
    return %c0_i32, %c0_i32_0 : i32, i32
  }
  func.func @transform_3(%arg0: i32) -> (i32, i32) {
    %c0_i32 = arith.constant 0 : i32
    %c0_i32_0 = arith.constant 0 : i32
    %c0_i32_1 = arith.constant 0 : i32
    return %c0_i32, %c0_i32_0 : i32, i32
  }
  func.func @transform_4(%arg0: i32) -> (i32, i32) {
    %c0_i32 = arith.constant 0 : i32
    %c0_i32_0 = arith.constant 0 : i32
    %c0_i32_1 = arith.constant 0 : i32
    return %c0_i32, %c0_i32_0 : i32, i32
  }
  func.func @transform_5(%arg0: i32) -> (i32, i32) {
    %c0_i32 = arith.constant 0 : i32
    %c0_i32_0 = arith.constant 0 : i32
    return %arg0, %c0_i32 : i32, i32
  }
}

</mosaic_0001>

<llo_original>
// kernel: tpu_custom_call.1
$region0: #{tpu_custom_call.1}
  #allocation0 [shape = 'u32[]', space=smem, size = 0x4, offset = 0x4, fixed_abs, tag = 'smem constant byte address 0x4 - core index']
  #allocation1 [shape = 'u32[144,128]{1,0:T(1,128)}', space=vmem, size = 0x12000, scoped, tag = 'internal scratch']
  %s0 = inlined_call_operand.hbm [shape: f32[8,32], index: 0, kind: input, shape index: {}]
  %s1 = inlined_call_operand.hbm [shape: bf16[32,128], index: 1, kind: input, shape index: {}]
  %s2 = inlined_call_operand.vmem [shape: f32[1,128], index: 2, kind: input, shape index: {}]
  %s3 = inlined_call_operand.hbm [shape: bf16[128,128], index: 3, kind: input, shape index: {}]
  %s4 = inlined_call_operand.vmem [shape: f32[1,128], index: 4, kind: input, shape index: {}]
  %s5 = inlined_call_operand.hbm [shape: bf16[8,128], index: 5, kind: output, shape index: {}]
  %s6 = sld [smem:[#allocation0]]
  $region42: #{tpu_custom_call.1} parent=0
    _
  %s8 = ssub.s32 1, %s6
  %s9 = scalar_select 0, %s8, %s6
  $region1: #{tpu_custom_call.1} parent=0
    #allocation2 [shape = 'u8[4096]{0}', space=vmem, size = 0x1000, scoped, tag = 'input window, operand 0, single buffered']
    #allocation3 [shape = 's32[1]{0}', space=sflag, size = 0x4, scoped, tag = 'scoped memory for tpu_custom_call.1']
    #allocation4 [shape = 's32[1]{0}', space=sflag, size = 0x4, scoped, tag = 'scoped memory for tpu_custom_call.1']
    #allocation5 [shape = 'u8[8192]{0}', space=vmem, size = 0x2000, scoped, tag = 'input window, operand 1, single buffered']
    #allocation6 [shape = 's32[1]{0}', space=sflag, size = 0x4, scoped, tag = 'scoped memory for tpu_custom_call.1']
    #allocation7 [shape = 'u8[32768]{0}', space=vmem, size = 0x8000, scoped, tag = 'input window, operand 3, single buffered']
    #allocation8 [shape = 'u8[2048]{0}', space=vmem, size = 0x800, scoped, tag = 'output window, operand 0, single buffered']
    %10 = vsyncpa [#allocation3], 0
    %11 = vsyncpa [#allocation6], 0
    %12 = vsyncpa [#allocation4], 0
    // Predicated region
    $region2: #{tpu_custom_call.1} parent=1 // pred_check
      _
    $region3: #{tpu_custom_call.1} parent=1 // pred_check_branch
      %14 = sbr.rel (0) target = $region5
    $region4: #{tpu_custom_call.1} parent=1 // pred_region
      %s16 = ssub.s32 128, 128
      %17 = vsyncadd [#allocation3], %s16
      %s19 = sshll.u32 [#allocation2], 4
      %s20 = int_to_ptr.vmem [resolvable:$true] %s19
      %22 = dma.hbm_to_vmem [thread:$0]  %s0, 128, %s20, [#allocation3]
    $region5: #{tpu_custom_call.1} parent=1 // pred_fallthru
      _
    // Predicated region
    $region6: #{tpu_custom_call.1} parent=1 // pred_check
      _
    $region7: #{tpu_custom_call.1} parent=1 // pred_check_branch
      %24 = sbr.rel (0) target = $region9
    $region8: #{tpu_custom_call.1} parent=1 // pred_region
      %s26 = ssub.s32 256, 256
      %27 = vsyncadd [#allocation6], %s26
      %s28 = sshll.u32 [#allocation5], 4
      %s29 = int_to_ptr.vmem [resolvable:$true] %s28
      %34 = dma.hbm_to_vmem [thread:$0]  %s1, 256, %s29, [#allocation6], 64, 64, 4
    $region9: #{tpu_custom_call.1} parent=1 // pred_fallthru
      _
    // Predicated region
    $region10: #{tpu_custom_call.1} parent=1 // pred_check
      _
    $region11: #{tpu_custom_call.1} parent=1 // pred_check_branch
      %36 = sbr.rel (0) target = $region13
    $region12: #{tpu_custom_call.1} parent=1 // pred_region
      _
    $region13: #{tpu_custom_call.1} parent=1 // pred_fallthru
      _
    // Predicated region
    $region14: #{tpu_custom_call.1} parent=1 // pred_check
      _
    $region15: #{tpu_custom_call.1} parent=1 // pred_check_branch
      %38 = sbr.rel (0) target = $region17
    $region16: #{tpu_custom_call.1} parent=1 // pred_region
      %s40 = ssub.s32 1024, 1024
      %41 = vsyncadd [#allocation6], %s40
      %s42 = sshll.u32 [#allocation7], 4
      %s43 = int_to_ptr.vmem [resolvable:$true] %s42
      %48 = dma.hbm_to_vmem [thread:$0]  %s3, 1024, %s43, [#allocation6], 64, 64, 4
    $region17: #{tpu_custom_call.1} parent=1 // pred_fallthru
      _
    // Predicated region
    $region18: #{tpu_custom_call.1} parent=1 // pred_check
      _
    $region19: #{tpu_custom_call.1} parent=1 // pred_check_branch
      %50 = sbr.rel (0) target = $region21
    $region20: #{tpu_custom_call.1} parent=1 // pred_region
      _
    $region21: #{tpu_custom_call.1} parent=1 // pred_fallthru
      _
    // Predicated region
    $region22: #{tpu_custom_call.1} parent=1 // pred_check
      _
    $region23: #{tpu_custom_call.1} parent=1 // pred_check_branch
      %52 = sbr.rel (0) target = $region25
    $region24: #{tpu_custom_call.1} parent=1 // pred_region
      %53 = dma.done [#allocation3], 128
    $region25: #{tpu_custom_call.1} parent=1 // pred_fallthru
      _
    // Predicated region
    $region26: #{tpu_custom_call.1} parent=1 // pred_check
      _
    $region27: #{tpu_custom_call.1} parent=1 // pred_check_branch
      %55 = sbr.rel (0) target = $region29
    $region28: #{tpu_custom_call.1} parent=1 // pred_region
      %56 = dma.done [#allocation6], 256
    $region29: #{tpu_custom_call.1} parent=1 // pred_fallthru
      _
    // Predicated region
    $region30: #{tpu_custom_call.1} parent=1 // pred_check
      _
    $region31: #{tpu_custom_call.1} parent=1 // pred_check_branch
      %58 = sbr.rel (0) target = $region33
    $region32: #{tpu_custom_call.1} parent=1 // pred_region
      %59 = dma.done [#allocation6], 1024
    $region33: #{tpu_custom_call.1} parent=1 // pred_fallthru
      _
    %v61 = vld [vmem:[#allocation2] sm:$0xff]
    %v62 = vpack.c.bf16 %v61, %v61
    %v63 = vld [vmem:[#allocation5] sm:$0xf]
    %v64 = vld [vmem:[#allocation5 + $0x4] sm:$0xf]
    %v65 = vld [vmem:[#allocation5 + $0x8] sm:$0xf]
    %v66 = vld [vmem:[#allocation5 + $0xc] sm:$0xf]
    %v67 = vld [vmem:[%s2] sm:$0x1]
    %v69 = vlaneseq
    %v70 = vshrl.u32 %v69, 7
    %v71 = vsub.s32 0, %v70
    %v72 = vrot.slane %v67, %v71
    %v78 = vunpack.c.l.b16 %v63
    %v79 = vunpack.c.l.b16 %v64
    %v80 = vunpack.c.l.b16 %v65
    %v81 = vunpack.c.l.b16 %v66
    %v82 = vpack.c.b16 %v79, %v78
    %v83 = vpack.c.b16 %v81, %v80
    %vm86 = vcmask 261120
    %v88 = vsel %vm86, %v62, 0
    %90 = vmatprep.subr.bf16.mxu0 0
    %91 = vmatpush1.bf16.msra.mxu0 0
    %92 = vmatprep.subr.bf16.mxu0 0
    %93 = vmatpush1.bf16.msra.mxu0 0
    %94 = vmatprep.subr.bf16.mxu0 0
    %95 = vmatpush1.bf16.msra.mxu0 0
    %96 = vmatprep.subr.bf16.mxu0 0
    %97 = vmatpush1.bf16.msra.mxu0 0
    %98 = vmatprep.subr.bf16.mxu0 0
    %99 = vmatpush1.bf16.msra.mxu0 0
    %100 = vmatprep.subr.bf16.mxu0 0
    %101 = vmatpush1.bf16.msra.mxu0 0
    %102 = vmatprep.subr.bf16.mxu0 0
    %103 = vmatpush1.bf16.msra.mxu0 %v83
    %104 = vmatprep.subr.bf16.mxu0 0
    %105 = vmatpush1.bf16.msra.mxu0 %v82
    %106 = vmatprep.subr.bf16.mxu0 0
    %107 = vmatpush2.bf16.msra.mxu0 0
    %108 = vmatprep.subr.bf16.mxu0 0
    %109 = vmatpush2.bf16.msra.mxu0 0
    %110 = vmatprep.subr.bf16.mxu0 0
    %111 = vmatpush2.bf16.msra.mxu0 0
    %112 = vmatprep.subr.bf16.mxu0 0
    %113 = vmatpush2.bf16.msra.mxu0 0
    %114 = vmatprep.subr.bf16.mxu0 0
    %115 = vmatpush2.bf16.msra.mxu0 0
    %116 = vmatprep.subr.bf16.mxu0 0
    %117 = vmatpush2.bf16.msra.mxu0 0
    %118 = vmatprep.subr.bf16.mxu0 0
    %119 = vmatpush2.bf16.msra.mxu0 0
    %120 = vmatprep.subr.bf16.mxu0 0
    %121 = vmatpush2.bf16.msra.mxu0 0
    %122 = vmatprep.mubr.bf16.mxu0 0
    %123 = vmatmul.mubr.bf16.gmra.mxu0 %v88
    %v124 = vpop.f32.mrf.mxu0
    %v125 = vadd.f32 %v72, %v124
    %v126 = vpop.f32.mrf.mxu0
    %v127 = vpop.f32.mrf.mxu0
    %v128 = vpop.f32.mrf.mxu0
    %129 = vdwg.mxu0
    %v130 = vtanh.pop %v125
    %v131 = vpack.c.bf16 %v130, %v130
    %v132 = vld [vmem:[#allocation7] sm:$0xf]
    %v133 = vld [vmem:[#allocation7 + $0x4] sm:$0xf]
    %v134 = vld [vmem:[#allocation7 + $0x8] sm:$0xf]
    %v135 = vld [vmem:[#allocation7 + $0xc] sm:$0xf]
    %v136 = vld [vmem:[#allocation7 + $0x10] sm:$0xf]
    %v137 = vld [vmem:[#allocation7 + $0x14] sm:$0xf]
    %v138 = vld [vmem:[#allocation7 + $0x18] sm:$0xf]
    %v139 = vld [vmem:[#allocation7 + $0x1c] sm:$0xf]
    %v140 = vld [vmem:[#allocation7 + $0x20] sm:$0xf]
    %v141 = vld [vmem:[#allocation7 + $0x24] sm:$0xf]
    %v142 = vld [vmem:[#allocation7 + $0x28] sm:$0xf]
    %v143 = vld [vmem:[#allocation7 + $0x2c] sm:$0xf]
    %v144 = vld [vmem:[#allocation7 + $0x30] sm:$0xf]
    %v145 = vld [vmem:[#allocation7 + $0x34] sm:$0xf]
    %v146 = vld [vmem:[#allocation7 + $0x38] sm:$0xf]
    %v147 = vld [vmem:[#allocation7 + $0x3c] sm:$0xf]
    %v148 = vld [vmem:[%s4] sm:$0x1]
    %v150 = vlaneseq
    %v151 = vshrl.u32 %v150, 7
    %v152 = vsub.s32 0, %v151
    %v153 = vrot.slane %v148, %v152
    %v171 = vunpack.c.l.b16 %v132
    %v172 = vunpack.c.l.b16 %v133
    %v173 = vunpack.c.l.b16 %v134
    %v174 = vunpack.c.l.b16 %v135
    %v175 = vunpack.c.l.b16 %v136
    %v176 = vunpack.c.l.b16 %v137
    %v177 = vunpack.c.l.b16 %v138
    %v178 = vunpack.c.l.b16 %v139
    %v179 = vunpack.c.l.b16 %v140
    %v180 = vunpack.c.l.b16 %v141
    %v181 = vunpack.c.l.b16 %v142
    %v182 = vunpack.c.l.b16 %v143
    %v183 = vunpack.c.l.b16 %v144
    %v184 = vunpack.c.l.b16 %v145
    %v185 = vunpack.c.l.b16 %v146
    %v186 = vunpack.c.l.b16 %v147
    %v187 = vpack.c.b16 %v172, %v171
    %v188 = vpack.c.b16 %v174, %v173
    %v189 = vpack.c.b16 %v176, %v175
    %v190 = vpack.c.b16 %v178, %v177
    %v191 = vpack.c.b16 %v180, %v179
    %v192 = vpack.c.b16 %v182, %v181
    %v193 = vpack.c.b16 %v184, %v183
    %v194 = vpack.c.b16 %v186, %v185
    %203 = vmatprep.subr.bf16.mxu0 0
    %204 = vmatpush1.bf16.msra.mxu0 %v194
    %205 = vmatprep.subr.bf16.mxu0 0
    %206 = vmatpush1.bf16.msra.mxu0 %v193
    %207 = vmatprep.subr.bf16.mxu0 0
    %208 = vmatpush1.bf16.msra.mxu0 %v192
    %209 = vmatprep.subr.bf16.mxu0 0
    %210 = vmatpush1.bf16.msra.mxu0 %v191
    %211 = vmatprep.subr.bf16.mxu0 0
    %212 = vmatpush1.bf16.msra.mxu0 %v190
    %213 = vmatprep.subr.bf16.mxu0 0
    %214 = vmatpush1.bf16.msra.mxu0 %v189
    %215 = vmatprep.subr.bf16.mxu0 0
    %216 = vmatpush1.bf16.msra.mxu0 %v188
    %217 = vmatprep.subr.bf16.mxu0 0
    %218 = vmatpush1.bf16.msra.mxu0 %v187
    %219 = vmatprep.subr.bf16.mxu0 0
    %220 = vmatpush2.bf16.msra.mxu0 0
    %221 = vmatprep.subr.bf16.mxu0 0
    %222 = vmatpush2.bf16.msra.mxu0 0
    %223 = vmatprep.subr.bf16.mxu0 0
    %224 = vmatpush2.bf16.msra.mxu0 0
    %225 = vmatprep.subr.bf16.mxu0 0
    %226 = vmatpush2.bf16.msra.mxu0 0
    %227 = vmatprep.subr.bf16.mxu0 0
    %228 = vmatpush2.bf16.msra.mxu0 0
    %229 = vmatprep.subr.bf16.mxu0 0
    %230 = vmatpush2.bf16.msra.mxu0 0
    %231 = vmatprep.subr.bf16.mxu0 0
    %232 = vmatpush2.bf16.msra.mxu0 0
    %233 = vmatprep.subr.bf16.mxu0 0
    %234 = vmatpush2.bf16.msra.mxu0 0
    %235 = vmatprep.mubr.bf16.mxu0 0
    %236 = vmatmul.mubr.bf16.gmra.mxu0 %v131
    %v237 = vpop.f32.mrf.mxu0
    %v238 = vadd.f32 %v153, %v237
    %v239 = vpop.f32.mrf.mxu0
    %v240 = vpop.f32.mrf.mxu0
    %v241 = vpop.f32.mrf.mxu0
    %242 = vdwg.mxu0
    %v243 = vxor.u32 %v238, 2147483648
    %v244 = vmul.f32 %v243, 1.442695
    %v245 = vpow.pop %v244
    %v246 = vadd.f32 %v245, 1.0
    %v247 = vrcp.pop %v246
    %v248 = vmul.f32 1.0, %v247
    %v249 = vpack.c.bf16 %v248, %v248
    %250 = vst [vmem:[#allocation8] sm:$0xf] %v249
    // Predicated region
    $region34: #{tpu_custom_call.1} parent=1 // pred_check
      _
    $region35: #{tpu_custom_call.1} parent=1 // pred_check_branch
      %252 = sbr.rel (0) target = $region37
    $region36: #{tpu_custom_call.1} parent=1 // pred_region
      %s254 = ssub.s32 64, 64
      %255 = vsyncadd [#allocation4], %s254
      %s257 = sshll.u32 [#allocation8], 4
      %s258 = int_to_ptr.vmem [resolvable:$true] %s257
      %260 = dma.vmem_to_hbm [thread:$0]  %s258, 64, %s5, [#allocation4]
    $region37: #{tpu_custom_call.1} parent=1 // pred_fallthru
      _
    // Predicated region
    $region38: #{tpu_custom_call.1} parent=1 // pred_check
      _
    $region39: #{tpu_custom_call.1} parent=1 // pred_check_branch
      %262 = sbr.rel (0) target = $region41
    $region40: #{tpu_custom_call.1} parent=1 // pred_region
      %263 = dma.done [#allocation4], 64
    $region41: #{tpu_custom_call.1} parent=1 // pred_fallthru
      _
    %264 = vsyncpa [#allocation3], 1
    %265 = vsyncpa [#allocation6], 1
    %266 = vsyncpa [#allocation4], 1

</llo_original>
